<compile_context>
chip_gen: v6e
topology: v6e:2x2x1
jax: 0.10.0
libtpu: 0.0.40
codegen_flags: <defaults>
</compile_context>

<pallas_src>
import functools

import jax
import jax.numpy as jnp
from jax.experimental import pallas as pl
from jax.experimental.pallas import tpu as pltpu


def _round_up(x, m):
    return ((x + m - 1) // m) * m


# ----------------------------- exact-erf GELU -------------------------------

_ERF_P = 0.3275911
_ERF_A1 = 0.254829592
_ERF_A2 = -0.284496736
_ERF_A3 = 1.421413741
_ERF_A4 = -1.453152027
_ERF_A5 = 1.061405429
_INV_SQRT2 = 0.7071067811865476


def _erf_f32(z):
    """Abramowitz & Stegun 7.1.26 erf approximation, |error| < 1.5e-7 (f32 math)."""
    sign = jnp.where(z >= 0.0, 1.0, -1.0)
    a = jnp.abs(z)
    t = 1.0 / (1.0 + _ERF_P * a)
    poly = t * (_ERF_A1 + t * (_ERF_A2 + t * (_ERF_A3 + t * (_ERF_A4 + t * _ERF_A5))))
    return sign * (1.0 - poly * jnp.exp(-a * a))


def _gelu_exact(x):
    """nn.GELU() default = exact erf variant: 0.5 * x * (1 + erf(x / sqrt(2)))."""
    return 0.5 * x * (1.0 + _erf_f32(x * _INV_SQRT2))


# -------------------------------- kernels -----------------------------------

def _mlp_kernel_accum_out(x_ref, w1_ref, b1_ref, w2_ref, b2_ref, o_ref):
    """f32 output: accumulate fc2 partials directly into the resident output tile."""
    k = pl.program_id(1)

    @pl.when(k == 0)
    def _init():
        # Seed the accumulator with the fc2 bias (removes the epilogue bias add).
        o_ref[...] = jnp.broadcast_to(b2_ref[...], o_ref.shape)

    # fc1 on this hidden tile: bf16 MXU inputs (x tile cast in-kernel), f32 accumulation.
    h = jnp.dot(x_ref[...].astype(jnp.bfloat16), w1_ref[...],
                preferred_element_type=jnp.float32)
    h = h + b1_ref[...]          # bias in f32
    h = _gelu_exact(h)           # exact-erf GELU in f32
    # fc2 partial product for this hidden tile, accumulated into the output block.
    o_ref[...] += jnp.dot(h.astype(w2_ref.dtype), w2_ref[...],
                          preferred_element_type=jnp.float32)
    # Dropout(p=0.0) is the identity -> nothing else to do.


def _mlp_kernel_scratch(x_ref, w1_ref, b1_ref, w2_ref, b2_ref, o_ref, acc_ref):
    """Non-f32 output: accumulate in an f32 VMEM scratch, cast once at the end."""
    k = pl.program_id(1)

    @pl.when(k == 0)
    def _init():
        acc_ref[...] = jnp.broadcast_to(b2_ref[...], acc_ref.shape)

    h = jnp.dot(x_ref[...].astype(jnp.bfloat16), w1_ref[...],
                preferred_element_type=jnp.float32)
    h = h + b1_ref[...]
    h = _gelu_exact(h)
    acc_ref[...] += jnp.dot(h.astype(w2_ref.dtype), w2_ref[...],
                            preferred_element_type=jnp.float32)

    @pl.when(k == pl.num_programs(1) - 1)
    def _fin():
        o_ref[...] = acc_ref[...].astype(o_ref.dtype)


# ----------------------------- tile selection --------------------------------

def _tpu_tile_defaults():
    """Per-generation row/hidden tile defaults and a VMEM budget with ~15% headroom."""
    try:
        vmem_cap = int(pltpu.get_tpu_info().vmem_capacity_bytes)
    except Exception:
        vmem_cap = 64 << 20  # conservative (v7x-sized) fallback
    kind = ""
    try:
        kind = jax.devices()[0].device_kind.lower()
    except Exception:
        pass

    vmem_budget = int(vmem_cap * 0.85)
    if vmem_cap <= (64 << 20):
        # v7x-class: 64 MiB VMEM per TensorCore, ~3.2 TB/s HBM -> tm~384-512 is enough.
        tm, th = 512, 512
    elif "v5" in kind:
        # v5e: 197 TF/s / ~0.82 TB/s ~ 240 flop/byte -> tm=256 already near balance.
        tm, th = 256, 1024
    else:
        # v6e-class: 918 TF/s / ~1.4 TB/s needs ~680 flop/byte of weight traffic.
        tm, th = 512, 1024
    return tm, th, vmem_budget


def _vmem_footprint(tm, th, d_in, d_out, x_bytes, out_bytes, use_scratch):
    fp = (
        2 * tm * d_in * x_bytes        # x row tile (double-buffered over i, resident over k)
        + 2 * d_in * th * 2            # W1 hidden tile (bf16, double-buffered over k)
        + 2 * th * 4                   # b1 hidden tile (f32)
        + 2 * th * d_out * 2           # W2 hidden tile (bf16, double-buffered over k)
        + 2 * d_out * 4                # b2 (f32)
        + 2 * tm * d_out * out_bytes   # output tile (doubles as accumulator when f32 out)
        + 2 * tm * th * 4              # fc1/GELU intermediate headroom (f32)
    )
    if use_scratch:
        fp += tm * d_out * 4           # f32 accumulator scratch
    return fp


# -------------------------------- wrapper ------------------------------------

@functools.partial(jax.jit, static_argnames=("tm", "th"))
def mlp_pallas(x, w1, b1, w2, b2, *, tm=None, th=None):
    """Fused MLP: GELU(x @ w1 + b1) @ w2 + b2 (dropout p=0.0 == identity).

    x: (M, D_in); w1: (D_in, H); b1: (H,) or (1, H); w2: (H, D_out); b2: (D_out,) or (1, D_out).
    Feature dims must be multiples of 128 (lane-dense). Rows need no padding: the last row
    block may be ragged; any garbage rows only affect masked / never-read output rows.
    Note: matmuls run in bf16 on the MXU (f32 accumulation) -> ~1e-2 relative deviation
    from an f32 PyTorch reference is expected.
    """
    M, D_in = x.shape
    H = w1.shape[1]
    D_out = w2.shape[1]
    assert D_in % 128 == 0 and H % 128 == 0 and D_out % 128 == 0, \
        "feature dims must be multiples of 128 (lane-dense)"

    # Biases as (1, N) f32 rows (accept raw PyTorch-style (N,) too).
    b1 = jnp.reshape(b1, (1, H)).astype(jnp.float32)
    b2 = jnp.reshape(b2, (1, D_out)).astype(jnp.float32)
    # Weights are re-streamed from HBM once per row tile -> bf16 in HBM halves that traffic.
    w1b = w1.astype(jnp.bfloat16)
    w2b = w2.astype(jnp.bfloat16)

    out_dtype = x.dtype
    use_scratch = jnp.dtype(out_dtype) != jnp.dtype(jnp.float32)
    x_bytes = jnp.dtype(x.dtype).itemsize
    out_bytes = jnp.dtype(out_dtype).itemsize

    d_tm, d_th, vmem_budget = _tpu_tile_defaults()
    tm = d_tm if tm is None else tm
    th = d_th if th is None else th

    # Row tile: multiple of 8 sublanes, never (much) larger than the row count.
    tm = min(tm, _round_up(M, 8))
    tm = max(8, _round_up(tm, 8))

    # Hidden tile: multiple of 128 that divides H.
    th = max(128, min(th, H))
    th = (th // 128) * 128
    while H % th:
        th -= 128

    # Auto-shrink tiles until the footprint fits the per-generation VMEM budget.
    while (_vmem_footprint(tm, th, D_in, D_out, x_bytes, out_bytes, use_scratch)
           > vmem_budget) and (th > 128 or tm > 128):
        if th > 128:
            th = max(128, (th // 2 // 128) * 128)
            while H % th:
                th -= 128
        else:
            tm = max(128, _round_up(tm // 2, 8))

    vmem_needed = _vmem_footprint(tm, th, D_in, D_out, x_bytes, out_bytes, use_scratch)
    vmem_limit = int(min(max(vmem_needed + (8 << 20), 32 << 20), vmem_budget))

    grid_m = pl.cdiv(M, tm)
    grid = (grid_m, H // th)

    kernel = _mlp_kernel_scratch if use_scratch else _mlp_kernel_accum_out
    scratch_shapes = [pltpu.VMEM((tm, D_out), jnp.float32)] if use_scratch else []

    cost = pl.CostEstimate(
        flops=2 * M * (D_in * H + H * D_out),
        transcendentals=M * H,
        bytes_accessed=(M * D_in * x_bytes
                        + grid_m * (D_in * H + H * D_out) * 2   # weights re-streamed per row tile
                        + H * 4 + D_out * 4
                        + M * D_out * out_bytes),
    )

    out = pl.pallas_call(
        kernel,
        out_shape=jax.ShapeDtypeStruct((M, D_out), out_dtype),
        grid_spec=pltpu.PrefetchScalarGridSpec(
            num_scalar_prefetch=0,
            grid=grid,
            in_specs=[
                pl.BlockSpec((tm, D_in), lambda i, k: (i, 0)),    # x row tile (resident over k)
                pl.BlockSpec((D_in, th), lambda i, k: (0, k)),    # W1 hidden tile
                pl.BlockSpec((1, th), lambda i, k: (0, k)),       # b1 hidden tile
                pl.BlockSpec((th, D_out), lambda i, k: (k, 0)),   # W2 hidden tile
                pl.BlockSpec((1, D_out), lambda i, k: (0, 0)),    # b2
            ],
            out_specs=pl.BlockSpec((tm, D_out), lambda i, k: (i, 0)),
            scratch_shapes=scratch_shapes,
        ),
        compiler_params=pltpu.CompilerParams(
            dimension_semantics=("parallel", "arbitrary"),
            vmem_limit_bytes=vmem_limit,
        ),
        cost_estimate=cost,
    )(x, w1b, b1, w2b, b2)

    return out


def mlp_reference(x, w1, b1, w2, b2):
    h = jax.nn.gelu(x @ w1 + b1, approximate=False)
    return h @ w2 + b2


if __name__ == "__main__":
    # Small but lane-aligned shapes: (batch, seq, in_features) token stream.
    batch, seq = 2, 8
    in_features = 256
    hidden_features = 512          # mlp_ratio-style expansion
    out_features = in_features     # out_features defaults to in_features

    key = jax.random.PRNGKey(0)
    kx, k1, k2, k3, k4 = jax.random.split(key, 5)

    x = jax.random.normal(kx, (batch, seq, in_features), dtype=jnp.float32)

    # Deterministic synthetic parameters (weights stored already transposed: (in, out);
    # biases in raw PyTorch-style 1-D layout).
    w1 = jax.random.normal(k1, (in_features, hidden_features), dtype=jnp.float32) * 0.02
    b1 = jax.random.normal(k2, (hidden_features,), dtype=jnp.float32) * 0.02
    w2 = jax.random.normal(k3, (hidden_features, out_features), dtype=jnp.float32) * 0.02
    b2 = jax.random.normal(k4, (out_features,), dtype=jnp.float32) * 0.02

    # Flatten tokens to rows for the kernel, then restore shape.
    x2d = x.reshape(batch * seq, in_features)
    # th=256 so the small demo exercises the hidden-dim reduction axis (grid = (1, 2)).
    out2d = mlp_pallas(x2d, w1, b1, w2, b2, th=256)
    out = out2d.reshape(batch, seq, out_features)
    jax.block_until_ready(out)

    ref = mlp_reference(x2d, w1, b1, w2, b2).reshape(batch, seq, out_features)
    # bf16 MXU inputs -> looser tolerance vs. the f32 reference.
    assert jnp.allclose(out, ref, atol=2e-2, rtol=2e-2), "mismatch vs reference"

    print("KERNEL_OK")
</pallas_src>

<mosaic_0001>
module attributes {stable_mosaic.version = 11 : i64} {
  func.func @_mlp_kernel_accum_out(%arg0: i32, %arg1: i32, %arg2: memref<16x256xf32, #tpu.memory_space<vmem>>, %arg3: memref<256x256xbf16, #tpu.memory_space<vmem>>, %arg4: memref<1x256xf32, #tpu.memory_space<vmem>>, %arg5: memref<256x256xbf16, #tpu.memory_space<vmem>>, %arg6: memref<1x256xf32, #tpu.memory_space<vmem>>, %arg7: memref<16x256xf32, #tpu.memory_space<vmem>>) attributes {dimension_semantics = [#tpu.dimension_semantics<parallel>, #tpu.dimension_semantics<arbitrary>], iteration_bounds = array<i64: 1, 2>, scalar_prefetch = 0 : i64, scratch_operands = 0 : i64, tpu.core_type = #tpu.core_type<tc>, window_params = [{transform_indices = @transform_0, window_bounds = array<i64: 16, 256>}, {transform_indices = @transform_1, window_bounds = array<i64: 256, 256>}, {transform_indices = @transform_2, window_bounds = array<i64: 1, 256>}, {transform_indices = @transform_3, window_bounds = array<i64: 256, 256>}, {pipeline_mode = #tpu.pipeline_mode<synchronous>, transform_indices = @transform_4, window_bounds = array<i64: 1, 256>}, {transform_indices = @transform_5, window_bounds = array<i64: 16, 256>}]} {
    %c0_i32 = arith.constant 0 : i32
    %0 = arith.cmpi eq, %arg1, %c0_i32 : i32
    %1 = arith.extui %0 : i1 to i32
    %c0_i32_0 = arith.constant 0 : i32
    %2 = arith.cmpi ne, %1, %c0_i32_0 : i32
    scf.if %2 {
      %c0_29 = arith.constant 0 : index
      %c0_30 = arith.constant 0 : index
      %57 = vector.load %arg6[%c0_29, %c0_30] : memref<1x256xf32, #tpu.memory_space<vmem>>, vector<1x256xf32>
      %58 = vector.shape_cast %57 : vector<1x256xf32> to vector<1x256xf32>
      %59 = vector.broadcast %58 : vector<1x256xf32> to vector<16x256xf32>
      %c0_31 = arith.constant 0 : index
      %c0_32 = arith.constant 0 : index
      %60 = vector.load %arg7[%c0_31, %c0_32] : memref<16x256xf32, #tpu.memory_space<vmem>>, vector<16x256xf32>
      tpu.vector_store %arg7[%c0_31, %c0_32], %59 {strides = array<i32>} : memref<16x256xf32, #tpu.memory_space<vmem>>, vector<16x256xf32>,
    } else {
    }
    %c0 = arith.constant 0 : index
    %c0_1 = arith.constant 0 : index
    %3 = vector.load %arg2[%c0, %c0_1] : memref<16x256xf32, #tpu.memory_space<vmem>>, vector<16x256xf32>
    %4 = arith.truncf %3 : vector<16x256xf32> to vector<16x256xbf16>
    %c0_2 = arith.constant 0 : index
    %c0_3 = arith.constant 0 : index
    %5 = vector.load %arg3[%c0_2, %c0_3] : memref<256x256xbf16, #tpu.memory_space<vmem>>, vector<256x256xbf16>
    %cst = arith.constant dense<0.000000e+00> : vector<16x256xf32>
    %6 = tpu.matmul %4, %5, %cst {dimension_numbers = #tpu.dot_dimension_numbers<[1], [0], [0], [1], [0, 0, 1, 1], [], []>} : vector<16x256xbf16>, vector<256x256xbf16>, vector<16x256xf32> -> vector<16x256xf32>
    %c0_4 = arith.constant 0 : index
    %c0_5 = arith.constant 0 : index
    %7 = vector.load %arg4[%c0_4, %c0_5] : memref<1x256xf32, #tpu.memory_space<vmem>>, vector<1x256xf32>
    %8 = vector.broadcast %7 : vector<1x256xf32> to vector<16x256xf32>
    %9 = arith.addf %6, %8 : vector<16x256xf32>
    %cst_6 = arith.constant 5.000000e-01 : f32
    %10 = vector.broadcast %cst_6 : f32 to vector<16x256xf32>
    %11 = arith.mulf %10, %9 : vector<16x256xf32>
    %cst_7 = arith.constant 0.707106769 : f32
    %12 = vector.broadcast %cst_7 : f32 to vector<16x256xf32>
    %13 = arith.mulf %9, %12 : vector<16x256xf32>
    %cst_8 = arith.constant 0.000000e+00 : f32
    %14 = vector.broadcast %cst_8 : f32 to vector<16x256xf32>
    %15 = arith.cmpf oge, %13, %14 : vector<16x256xf32>
    %cst_9 = arith.constant 1.000000e+00 : f32
    %cst_10 = arith.constant -1.000000e+00 : f32
    %16 = vector.broadcast %cst_9 : f32 to vector<16x256xf32>
    %17 = vector.broadcast %cst_10 : f32 to vector<16x256xf32>
    %18 = arith.select %15, %16, %17 : vector<16x256xi1>, vector<16x256xf32>
    %19 = math.absf %13 : vector<16x256xf32>
    %cst_11 = arith.constant 0.327591091 : f32
    %20 = vector.broadcast %cst_11 : f32 to vector<16x256xf32>
    %21 = arith.mulf %20, %19 : vector<16x256xf32>
    %cst_12 = arith.constant 1.000000e+00 : f32
    %22 = vector.broadcast %cst_12 : f32 to vector<16x256xf32>
    %23 = arith.addf %22, %21 : vector<16x256xf32>
    %cst_13 = arith.constant 1.000000e+00 : f32
    %24 = vector.broadcast %cst_13 : f32 to vector<16x256xf32>
    %25 = arith.divf %24, %23 : vector<16x256xf32>
    %cst_14 = arith.constant 1.06140542 : f32
    %26 = vector.broadcast %cst_14 : f32 to vector<16x256xf32>
    %27 = arith.mulf %25, %26 : vector<16x256xf32>
    %cst_15 = arith.constant -1.45315206 : f32
    %28 = vector.broadcast %cst_15 : f32 to vector<16x256xf32>
    %29 = arith.addf %28, %27 : vector<16x256xf32>
    %30 = arith.mulf %25, %29 : vector<16x256xf32>
    %cst_16 = arith.constant 1.42141378 : f32
    %31 = vector.broadcast %cst_16 : f32 to vector<16x256xf32>
    %32 = arith.addf %31, %30 : vector<16x256xf32>
    %33 = arith.mulf %25, %32 : vector<16x256xf32>
    %cst_17 = arith.constant -0.284496725 : f32
    %34 = vector.broadcast %cst_17 : f32 to vector<16x256xf32>
    %35 = arith.addf %34, %33 : vector<16x256xf32>
    %36 = arith.mulf %25, %35 : vector<16x256xf32>
    %cst_18 = arith.constant 0.254829586 : f32
    %37 = vector.broadcast %cst_18 : f32 to vector<16x256xf32>
    %38 = arith.addf %37, %36 : vector<16x256xf32>
    %39 = arith.mulf %25, %38 : vector<16x256xf32>
    %cst_19 = arith.constant 0.000000e+00 : f32
    %40 = vector.broadcast %cst_19 : f32 to vector<16x256xf32>
    %41 = arith.subf %40, %19 : vector<16x256xf32>
    %42 = arith.mulf %41, %19 : vector<16x256xf32>
    %43 = math.exp %42 : vector<16x256xf32>
    %44 = arith.mulf %39, %43 : vector<16x256xf32>
    %cst_20 = arith.constant 1.000000e+00 : f32
    %45 = vector.broadcast %cst_20 : f32 to vector<16x256xf32>
    %46 = arith.subf %45, %44 : vector<16x256xf32>
    %47 = arith.mulf %18, %46 : vector<16x256xf32>
    %cst_21 = arith.constant 1.000000e+00 : f32
    %48 = vector.broadcast %cst_21 : f32 to vector<16x256xf32>
    %49 = arith.addf %48, %47 : vector<16x256xf32>
    %50 = arith.mulf %11, %49 : vector<16x256xf32>
    %c0_22 = arith.constant 0 : index
    %c0_23 = arith.constant 0 : index
    %51 = vector.load %arg7[%c0_22, %c0_23] : memref<16x256xf32, #tpu.memory_space<vmem>>, vector<16x256xf32>
    %52 = arith.truncf %50 : vector<16x256xf32> to vector<16x256xbf16>
    %c0_24 = arith.constant 0 : index
    %c0_25 = arith.constant 0 : index
    %53 = vector.load %arg5[%c0_24, %c0_25] : memref<256x256xbf16, #tpu.memory_space<vmem>>, vector<256x256xbf16>
    %cst_26 = arith.constant dense<0.000000e+00> : vector<16x256xf32>
    %54 = tpu.matmul %52, %53, %cst_26 {dimension_numbers = #tpu.dot_dimension_numbers<[1], [0], [0], [1], [0, 0, 1, 1], [], []>} : vector<16x256xbf16>, vector<256x256xbf16>, vector<16x256xf32> -> vector<16x256xf32>
    %55 = arith.addf %51, %54 : vector<16x256xf32>
    %c0_27 = arith.constant 0 : index
    %c0_28 = arith.constant 0 : index
    %56 = vector.load %arg7[%c0_27, %c0_28] : memref<16x256xf32, #tpu.memory_space<vmem>>, vector<16x256xf32>
    tpu.vector_store %arg7[%c0_27, %c0_28], %55 {strides = array<i32>} : memref<16x256xf32, #tpu.memory_space<vmem>>, vector<16x256xf32>,
    return
  }
  func.func @transform_0(%arg0: i32, %arg1: i32) -> (i32, i32) {
    %c0_i32 = arith.constant 0 : i32
    %c0_i32_0 = arith.constant 0 : i32
    return %arg0, %c0_i32 : i32, i32
  }
  func.func @transform_1(%arg0: i32, %arg1: i32) -> (i32, i32) {
    %c0_i32 = arith.constant 0 : i32
    %c0_i32_0 = arith.constant 0 : i32
    return %c0_i32, %arg1 : i32, i32
  }
  func.func @transform_2(%arg0: i32, %arg1: i32) -> (i32, i32) {
    %c0_i32 = arith.constant 0 : i32
    %c0_i32_0 = arith.constant 0 : i32
    return %c0_i32, %arg1 : i32, i32
  }
  func.func @transform_3(%arg0: i32, %arg1: i32) -> (i32, i32) {
    %c0_i32 = arith.constant 0 : i32
    %c0_i32_0 = arith.constant 0 : i32
    return %arg1, %c0_i32 : i32, i32
  }
  func.func @transform_4(%arg0: i32, %arg1: i32) -> (i32, i32) {
    %c0_i32 = arith.constant 0 : i32
    %c0_i32_0 = arith.constant 0 : i32
    %c0_i32_1 = arith.constant 0 : i32
    return %c0_i32, %c0_i32_0 : i32, i32
  }
  func.func @transform_5(%arg0: i32, %arg1: i32) -> (i32, i32) {
    %c0_i32 = arith.constant 0 : i32
    %c0_i32_0 = arith.constant 0 : i32
    return %arg0, %c0_i32 : i32, i32
  }
}

</mosaic_0001>

<llo_original>
// kernel: mlp_pallas.1
$region0: #{mlp_pallas.1}
  #allocation0 [shape = 'u32[]', space=smem, size = 0x4, offset = 0x4, fixed_abs, tag = 'smem constant byte address 0x4 - core index']
  #allocation1 [shape = 'u32[144,128]{1,0:T(1,128)}', space=vmem, size = 0x12000, scoped, tag = 'internal scratch']
  %s0 = inlined_call_operand.vmem [shape: f32[16,256], index: 0, kind: input, shape index: {}]
  %s1 = inlined_call_operand.vmem [shape: bf16[256,512], index: 1, kind: input, shape index: {}]
  %s2 = inlined_call_operand.vmem [shape: f32[1,512], index: 2, kind: input, shape index: {}]
  %s3 = inlined_call_operand.vmem [shape: bf16[512,256], index: 3, kind: input, shape index: {}]
  %s4 = inlined_call_operand.vmem [shape: f32[1,256], index: 4, kind: input, shape index: {}]
  %s5 = inlined_call_operand.hbm [shape: f32[16,256], index: 5, kind: output, shape index: {}]
  %s6 = sld [smem:[#allocation0]]
  $region95: #{mlp_pallas.1} parent=0
    _
  %s8 = ssub.s32 1, %s6
  %s9 = scalar_select 0, %s8, %s6
  $region1: #{mlp_pallas.1} parent=0
    #allocation2 [shape = 'u8[262144]{0}', space=vmem, size = 0x40000, scoped, tag = 'input window, operand 1']
    #allocation3 [shape = 'u8[16384]{0}', space=vmem, size = 0x4000, scoped, tag = 'output window, operand 0, single buffered']
    #allocation4 [shape = 's32[2]{0}', space=sflag, size = 0x8, scoped, tag = 'scoped memory for mlp_pallas.1']
    %10 = vsyncpa [#allocation4], 0
    loop: start=0, step=1, limit=4
    $region2: #{mlp_pallas.1} parent=1 // loop_pre_header
      _
    $region3: #{mlp_pallas.1} parent=1 // loop_header
      %s12 = sphi 0, %s16
      %p13 = scmp.ge.s32.totalorder %s12, 4
      %s19 = sphi 0, %s31
      %s20 = sphi 0, %s27
      %s21 = sphi 0, %s19
      %s22 = sphi 0, %s20
      %s23 = sphi 0, %s21
      %s24 = sphi 0, %s22
      %s34 = sphi 0, %s36
      %s37 = sphi 0, %s34
      %s38 = sphi 0, %s37
      %s54 = sphi 0, %s38
      %s60 = sphi 0, %s62
      %s63 = sphi 0, %s60
      %s64 = sphi 0, %s63
      %s80 = sphi 0, %s64
      %s86 = sphi 0, %s88
      %s89 = sphi 0, %s86
      %s90 = sphi 0, %s89
      %s106 = sphi 0, %s90
      %s112 = sphi 0, %s114
      %s115 = sphi 0, %s112
      %s116 = sphi 0, %s115
      %s132 = sphi 0, %s116
      %s136 = sphi 0, %s136
      %s138 = sphi 0, %s136
      %s139 = sphi 0, %s138
      %s153 = sphi 0, %s139
      %s159 = sphi 0, %s161
      %s162 = sphi 0, %s159
      %s163 = sphi 0, %s162
      %s179 = sphi 0, %s163
    $region4: #{mlp_pallas.1} parent=1 // loop_header_branch
      %15 = sbr.rel (%p13) target = $region8
    $region5: #{mlp_pallas.1} parent=1 // loop_body
      %s17 = ssub.s32 %s12, 1
      %s18 = ssub.s32 %s12, 2
      %s25 = sadd.s32 1, %s20
      %p26 = scmp.ge.s32.totalorder %s25, 2
      %s27 = scalar_select %p26, 0, %s25
      %s28 = sadd.s32 1, %s19
      %s29 = scalar_select %p26, %s28, %s19
      %p30 = scmp.ge.s32.totalorder %s29, 1
      %s31 = scalar_select %p30, 0, %s29
      %s32 = ssub.s32 %s19, %s31
      %p33 = scmp.eq.s32.totalorder %s32, 0
      %s35 = sadd.s32 %s34, 1
      %s36 = scalar_select %p33, %s34, %s35
      %p39 = pneg %p33
      %p40 = scmp.eq.s32.totalorder %s12, 1
      %p41 = por %p39, %p40
      %p42 = scmp.ne.s32.totalorder %s34, %s37
      %p43 = scmp.eq.s32.totalorder %s12, 0
      %p44 = por %p42, %p43
      %p45 = scmp.ne.s32.totalorder %s34, %s37
      %p46 = scmp.eq.s32.totalorder %s17, 1
      %p47 = por %p45, %p46
      %p48 = scmp.ne.s32.totalorder %s37, %s38
      %p49 = scmp.eq.s32.totalorder %s17, 0
      %p50 = por %p48, %p49
      %p51 = scmp.ne.s32.totalorder %s37, %s38
      %p52 = scmp.eq.s32.totalorder %s18, 1
      %p53 = por %p51, %p52
      %p55 = scmp.ne.s32.totalorder %s38, %s54
      %p56 = scmp.eq.s32.totalorder %s18, 0
      %p57 = por %p55, %p56
      %s58 = ssub.s32 %s20, %s27
      %p59 = scmp.eq.s32.totalorder %s58, 0
      %s61 = sadd.s32 %s60, 1
      %s62 = scalar_select %p59, %s60, %s61
      %p65 = pneg %p59
      %p66 = scmp.eq.s32.totalorder %s12, 1
      %p67 = por %p65, %p66
      %p68 = scmp.ne.s32.totalorder %s60, %s63
      %p69 = scmp.eq.s32.totalorder %s12, 0
      %p70 = por %p68, %p69
      %p71 = scmp.ne.s32.totalorder %s60, %s63
      %p72 = scmp.eq.s32.totalorder %s17, 1
      %p73 = por %p71, %p72
      %p74 = scmp.ne.s32.totalorder %s63, %s64
      %p75 = scmp.eq.s32.totalorder %s17, 0
      %p76 = por %p74, %p75
      %p77 = scmp.ne.s32.totalorder %s63, %s64
      %p78 = scmp.eq.s32.totalorder %s18, 1
      %p79 = por %p77, %p78
      %p81 = scmp.ne.s32.totalorder %s64, %s80
      %p82 = scmp.eq.s32.totalorder %s18, 0
      %p83 = por %p81, %p82
      %s84 = ssub.s32 %s20, %s27
      %p85 = scmp.eq.s32.totalorder %s84, 0
      %s87 = sadd.s32 %s86, 1
      %s88 = scalar_select %p85, %s86, %s87
      %p91 = pneg %p85
      %p92 = scmp.eq.s32.totalorder %s12, 1
      %p93 = por %p91, %p92
      %p94 = scmp.ne.s32.totalorder %s86, %s89
      %p95 = scmp.eq.s32.totalorder %s12, 0
      %p96 = por %p94, %p95
      %p97 = scmp.ne.s32.totalorder %s86, %s89
      %p98 = scmp.eq.s32.totalorder %s17, 1
      %p99 = por %p97, %p98
      %p100 = scmp.ne.s32.totalorder %s89, %s90
      %p101 = scmp.eq.s32.totalorder %s17, 0
      %p102 = por %p100, %p101
      %p103 = scmp.ne.s32.totalorder %s89, %s90
      %p104 = scmp.eq.s32.totalorder %s18, 1
      %p105 = por %p103, %p104
      %p107 = scmp.ne.s32.totalorder %s90, %s106
      %p108 = scmp.eq.s32.totalorder %s18, 0
      %p109 = por %p107, %p108
      %s110 = ssub.s32 %s20, %s27
      %p111 = scmp.eq.s32.totalorder %s110, 0
      %s113 = sadd.s32 %s112, 1
      %s114 = scalar_select %p111, %s112, %s113
      %p117 = pneg %p111
      %p118 = scmp.eq.s32.totalorder %s12, 1
      %p119 = por %p117, %p118
      %p120 = scmp.ne.s32.totalorder %s112, %s115
      %p121 = scmp.eq.s32.totalorder %s12, 0
      %p122 = por %p120, %p121
      %p123 = scmp.ne.s32.totalorder %s112, %s115
      %p124 = scmp.eq.s32.totalorder %s17, 1
      %p125 = por %p123, %p124
      %p126 = scmp.ne.s32.totalorder %s115, %s116
      %p127 = scmp.eq.s32.totalorder %s17, 0
      %p128 = por %p126, %p127
      %p129 = scmp.ne.s32.totalorder %s115, %s116
      %p130 = scmp.eq.s32.totalorder %s18, 1
      %p131 = por %p129, %p130
      %p133 = scmp.ne.s32.totalorder %s116, %s132
      %p134 = scmp.eq.s32.totalorder %s18, 0
      %p135 = por %p133, %p134
      %s137 = sadd.s32 %s136, 1
      %p140 = scmp.eq.s32.totalorder %s12, 1
      %p141 = scmp.ne.s32.totalorder %s136, %s138
      %p142 = scmp.eq.s32.totalorder %s12, 0
      %p143 = por %p141, %p142
      %p144 = scmp.ne.s32.totalorder %s136, %s138
      %p145 = scmp.eq.s32.totalorder %s17, 1
      %p146 = por %p144, %p145
      %p147 = scmp.ne.s32.totalorder %s138, %s139
      %p148 = scmp.eq.s32.totalorder %s17, 0
      %p149 = por %p147, %p148
      %p150 = scmp.ne.s32.totalorder %s138, %s139
      %p151 = scmp.eq.s32.totalorder %s18, 1
      %p152 = por %p150, %p151
      %p154 = scmp.ne.s32.totalorder %s139, %s153
      %p155 = scmp.eq.s32.totalorder %s18, 0
      %p156 = por %p154, %p155
      %s157 = ssub.s32 %s19, %s31
      %p158 = scmp.eq.s32.totalorder %s157, 0
      %s160 = sadd.s32 %s159, 1
      %s161 = scalar_select %p158, %s159, %s160
      %p164 = pneg %p158
      %p165 = scmp.eq.s32.totalorder %s12, 1
      %p166 = por %p164, %p165
      %p167 = scmp.ne.s32.totalorder %s159, %s162
      %p168 = scmp.eq.s32.totalorder %s12, 0
      %p169 = por %p167, %p168
      %p170 = scmp.ne.s32.totalorder %s159, %s162
      %p171 = scmp.eq.s32.totalorder %s17, 1
      %p172 = por %p170, %p171
      %p173 = scmp.ne.s32.totalorder %s162, %s163
      %p174 = scmp.eq.s32.totalorder %s17, 0
      %p175 = por %p173, %p174
      %p176 = scmp.ne.s32.totalorder %s162, %s163
      %p177 = scmp.eq.s32.totalorder %s18, 1
      %p178 = por %p176, %p177
      %p180 = scmp.ne.s32.totalorder %s163, %s179
      %p181 = scmp.eq.s32.totalorder %s18, 0
      %p182 = por %p180, %p181
      %p183 = scmp.le.s32.totalorder 1, %s12
      %p184 = scmp.lt.s32.totalorder %s12, 3
      %p185 = pnand %p183, %p184
      %p186 = pneg %p185
      // Predicated region
      $region9: #{mlp_pallas.1} parent=5 // pred_check
        _
      $region10: #{mlp_pallas.1} parent=5 // pred_check_branch
        %188 = sbr.rel (%p185) target = $region12
      $region11: #{mlp_pallas.1} parent=5 // pred_region
        %s189 = ssub.s32 %s12, 1
        // Predicated region
        $region13: #{mlp_pallas.1} parent=11 // pred_check
          %p190 = pneg %p50
        $region14: #{mlp_pallas.1} parent=11 // pred_check_branch
          %192 = sbr.rel (%p190) target = $region16
        $region15: #{mlp_pallas.1} parent=11 // pred_region
          %s193 = smul.u32 2, %s21
          %p194 = scmp.lt.s32.totalorder %s193, 1
          %s195 = scalar_select %p194, %s193, 1
          %s196 = smul.addr %s195, 2
          %s197 = smul.addr %s196, 8
          %s198 = scalar_lea.vmem %s0, %s197
          %s199 = smul.u32 2, %s21
        $region16: #{mlp_pallas.1} parent=11 // pred_fallthru
          _
        // Predicated region
        $region17: #{mlp_pallas.1} parent=11 // pred_check
          %p200 = pneg %p149
        $region18: #{mlp_pallas.1} parent=11 // pred_check_branch
          %202 = sbr.rel (%p200) target = $region20
        $region19: #{mlp_pallas.1} parent=11 // pred_region
          _
        $region20: #{mlp_pallas.1} parent=11 // pred_fallthru
          _
      $region12: #{mlp_pallas.1} parent=5 // pred_fallthru
        _
      %p203 = scmp.lt.s32.totalorder %s12, 2
      // Predicated region
      $region21: #{mlp_pallas.1} parent=5 // pred_check
        %p204 = pneg %p203
      $region22: #{mlp_pallas.1} parent=5 // pred_check_branch
        %206 = sbr.rel (%p204) target = $region24
      $region23: #{mlp_pallas.1} parent=5 // pred_region
        // Predicated region
        $region25: #{mlp_pallas.1} parent=23 // pred_check
          %p207 = pneg %p70
        $region26: #{mlp_pallas.1} parent=23 // pred_check_branch
          %209 = sbr.rel (%p207) target = $region28
        $region27: #{mlp_pallas.1} parent=23 // pred_region
          %s210 = sand.u32 %s60, 1
          %s211 = sand.u32 %s60, 1
          %s212 = smul.addr %s211, 256
          %s213 = scalar_lea.vmem [#allocation2], %s212
          %s214 = smul.u32 2, %s20
          %s215 = smul.addr %s214, 4
          %s216 = scalar_lea.vmem %s1, %s215
          // Predicated region
          $region29: #{mlp_pallas.1} parent=27 // pred_check
            _
          $region30: #{mlp_pallas.1} parent=27 // pred_check_branch
            %218 = sbr.rel (0) target = $region32
          $region31: #{mlp_pallas.1} parent=27 // pred_region
            // Predicated region
            $region33: #{mlp_pallas.1} parent=31 // pred_check
              _
            $region34: #{mlp_pallas.1} parent=31 // pred_check_branch
              %220 = sbr.rel (0) target = $region36
            $region35: #{mlp_pallas.1} parent=31 // pred_region
              // Predicated region
              $region48: #{mlp_pallas.1} parent=35 // pred_check
                _
              $region49: #{mlp_pallas.1} parent=35 // pred_check_branch
                %298 = sbr.rel (0) target = $region51
              $region50: #{mlp_pallas.1} parent=35 // pred_region
                loop: start=0, step=1, limit=1
                $region52: #{mlp_pallas.1} parent=50 // loop_pre_header
                  _
                $region53: #{mlp_pallas.1} parent=50 // loop_header
                  %s300 = sphi 0, %s304
                  %p301 = scmp.ge.s32.totalorder %s300, 1
                  %s305 = sphi %s216, %s216
                  %s306 = sphi %s213, %s213
                $region54: #{mlp_pallas.1} parent=50 // loop_header_branch
                  %303 = sbr.rel (%p301) target = $region58
                $region55: #{mlp_pallas.1} parent=50 // loop_body
                  %v307 = vld [vmem:[%s305] sm:$0xff]
                  %308 = vst [vmem:[%s306] sm:$0xff] %v307
                  %v309 = vld [vmem:[%s305 + $0x10] sm:$0xff]
                  %310 = vst [vmem:[%s306 + $0x8] sm:$0xff] %v309
                  %v311 = vld [vmem:[%s305 + $0x20] sm:$0xff]
                  %312 = vst [vmem:[%s306 + $0x10] sm:$0xff] %v311
                  %v313 = vld [vmem:[%s305 + $0x30] sm:$0xff]
                  %314 = vst [vmem:[%s306 + $0x18] sm:$0xff] %v313
                  %v315 = vld [vmem:[%s305 + $0x40] sm:$0xff]
                  %316 = vst [vmem:[%s306 + $0x20] sm:$0xff] %v315
                  %v317 = vld [vmem:[%s305 + $0x50] sm:$0xff]
                  %318 = vst [vmem:[%s306 + $0x28] sm:$0xff] %v317
                  %v319 = vld [vmem:[%s305 + $0x60] sm:$0xff]
                  %320 = vst [vmem:[%s306 + $0x30] sm:$0xff] %v319
                  %v321 = vld [vmem:[%s305 + $0x70] sm:$0xff]
                  %322 = vst [vmem:[%s306 + $0x38] sm:$0xff] %v321
                  %v323 = vld [vmem:[%s305 + $0x80] sm:$0xff]
                  %324 = vst [vmem:[%s306 + $0x40] sm:$0xff] %v323
                  %v325 = vld [vmem:[%s305 + $0x90] sm:$0xff]
                  %326 = vst [vmem:[%s306 + $0x48] sm:$0xff] %v325
                  %v327 = vld [vmem:[%s305 + $0xa0] sm:$0xff]
                  %328 = vst [vmem:[%s306 + $0x50] sm:$0xff] %v327
                  %v329 = vld [vmem:[%s305 + $0xb0] sm:$0xff]
                  %330 = vst [vmem:[%s306 + $0x58] sm:$0xff] %v329
                  %v331 = vld [vmem:[%s305 + $0xc0] sm:$0xff]
                  %332 = vst [vmem:[%s306 + $0x60] sm:$0xff] %v331
                  %v333 = vld [vmem:[%s305 + $0xd0] sm:$0xff]
                  %334 = vst [vmem:[%s306 + $0x68] sm:$0xff] %v333
                  %v335 = vld [vmem:[%s305 + $0xe0] sm:$0xff]
                  %336 = vst [vmem:[%s306 + $0x70] sm:$0xff] %v335
                  %v337 = vld [vmem:[%s305 + $0xf0] sm:$0xff]
                  %338 = vst [vmem:[%s306 + $0x78] sm:$0xff] %v337
                  %v339 = vld [vmem:[%s305 + $0x100] sm:$0xff]
                  %340 = vst [vmem:[%s306 + $0x80] sm:$0xff] %v339
                  %v341 = vld [vmem:[%s305 + $0x110] sm:$0xff]
                  %342 = vst [vmem:[%s306 + $0x88] sm:$0xff] %v341
                  %v343 = vld [vmem:[%s305 + $0x120] sm:$0xff]
                  %344 = vst [vmem:[%s306 + $0x90] sm:$0xff] %v343
                  %v345 = vld [vmem:[%s305 + $0x130] sm:$0xff]
                  %346 = vst [vmem:[%s306 + $0x98] sm:$0xff] %v345
                  %v347 = vld [vmem:[%s305 + $0x140] sm:$0xff]
                  %348 = vst [vmem:[%s306 + $0xa0] sm:$0xff] %v347
                  %v349 = vld [vmem:[%s305 + $0x150] sm:$0xff]
                  %350 = vst [vmem:[%s306 + $0xa8] sm:$0xff] %v349
                  %v351 = vld [vmem:[%s305 + $0x160] sm:$0xff]
                  %352 = vst [vmem:[%s306 + $0xb0] sm:$0xff] %v351
                  %v353 = vld [vmem:[%s305 + $0x170] sm:$0xff]
                  %354 = vst [vmem:[%s306 + $0xb8] sm:$0xff] %v353
                  %v355 = vld [vmem:[%s305 + $0x180] sm:$0xff]
                  %356 = vst [vmem:[%s306 + $0xc0] sm:$0xff] %v355
                  %v357 = vld [vmem:[%s305 + $0x190] sm:$0xff]
                  %358 = vst [vmem:[%s306 + $0xc8] sm:$0xff] %v357
                  %v359 = vld [vmem:[%s305 + $0x1a0] sm:$0xff]
                  %360 = vst [vmem:[%s306 + $0xd0] sm:$0xff] %v359
                  %v361 = vld [vmem:[%s305 + $0x1b0] sm:$0xff]
                  %362 = vst [vmem:[%s306 + $0xd8] sm:$0xff] %v361
                  %v363 = vld [vmem:[%s305 + $0x1c0] sm:$0xff]
                  %364 = vst [vmem:[%s306 + $0xe0] sm:$0xff] %v363
                  %v365 = vld [vmem:[%s305 + $0x1d0] sm:$0xff]
                  %366 = vst [vmem:[%s306 + $0xe8] sm:$0xff] %v365
                  %v367 = vld [vmem:[%s305 + $0x1e0] sm:$0xff]
                  %368 = vst [vmem:[%s306 + $0xf0] sm:$0xff] %v367
                  %v369 = vld [vmem:[%s305 + $0x1f0] sm:$0xff]
                  %370 = vst [vmem:[%s306 + $0xf8] sm:$0xff] %v369
                $region56: #{mlp_pallas.1} parent=50 // loop_footer
                  %s304 = sadd.s32 1, %s300
                $region57: #{mlp_pallas.1} parent=50 // loop_footer_branch
                  %299 = sbr.rel target = $region53
                $region58: #{mlp_pallas.1} parent=50 // loop_exit
                  _
              $region51: #{mlp_pallas.1} parent=35 // pred_fallthru
                _
              // Predicated region
              $region59: #{mlp_pallas.1} parent=35 // pred_check
                _
              $region60: #{mlp_pallas.1} parent=35 // pred_check_branch
                %372 = sbr.rel target = $region62
              $region61: #{mlp_pallas.1} parent=35 // pred_region
                _
              $region62: #{mlp_pallas.1} parent=35 // pred_fallthru
                _
            $region36: #{mlp_pallas.1} parent=31 // pred_fallthru
              _
            // Predicated region
            $region37: #{mlp_pallas.1} parent=31 // pred_check
              _
            $region38: #{mlp_pallas.1} parent=31 // pred_check_branch
              %222 = sbr.rel target = $region40
            $region39: #{mlp_pallas.1} parent=31 // pred_region
              %s224 = ssub.s32 256, 1
              loop: start=0, step=1, limit=1
              $region41: #{mlp_pallas.1} parent=39 // loop_pre_header
                _
              $region42: #{mlp_pallas.1} parent=39 // loop_header
                %s226 = sphi 0, %s230
                %p227 = scmp.ge.s32.totalorder %s226, 1
                %s231 = sphi %s216, %s216
                %s232 = sphi %s213, %s213
              $region43: #{mlp_pallas.1} parent=39 // loop_header_branch
                %229 = sbr.rel (%p227) target = $region47
              $region44: #{mlp_pallas.1} parent=39 // loop_body
                %v233 = vld [vmem:[%s231] sm:%s224]
                %234 = vst [vmem:[%s232] sm:%s224] %v233
                %v235 = vld [vmem:[%s231 + $0x10] sm:%s224]
                %236 = vst [vmem:[%s232 + $0x8] sm:%s224] %v235
                %v237 = vld [vmem:[%s231 + $0x20] sm:%s224]
                %238 = vst [vmem:[%s232 + $0x10] sm:%s224] %v237
                %v239 = vld [vmem:[%s231 + $0x30] sm:%s224]
                %240 = vst [vmem:[%s232 + $0x18] sm:%s224] %v239
                %v241 = vld [vmem:[%s231 + $0x40] sm:%s224]
                %242 = vst [vmem:[%s232 + $0x20] sm:%s224] %v241
                %v243 = vld [vmem:[%s231 + $0x50] sm:%s224]
                %244 = vst [vmem:[%s232 + $0x28] sm:%s224] %v243
                %v245 = vld [vmem:[%s231 + $0x60] sm:%s224]
                %246 = vst [vmem:[%s232 + $0x30] sm:%s224] %v245
                %v247 = vld [vmem:[%s231 + $0x70] sm:%s224]
                %248 = vst [vmem:[%s232 + $0x38] sm:%s224] %v247
                %v249 = vld [vmem:[%s231 + $0x80] sm:%s224]
                %250 = vst [vmem:[%s232 + $0x40] sm:%s224] %v249
                %v251 = vld [vmem:[%s231 + $0x90] sm:%s224]
                %252 = vst [vmem:[%s232 + $0x48] sm:%s224] %v251
                %v253 = vld [vmem:[%s231 + $0xa0] sm:%s224]
                %254 = vst [vmem:[%s232 + $0x50] sm:%s224] %v253
                %v255 = vld [vmem:[%s231 + $0xb0] sm:%s224]
                %256 = vst [vmem:[%s232 + $0x58] sm:%s224] %v255
                %v257 = vld [vmem:[%s231 + $0xc0] sm:%s224]
                %258 = vst [vmem:[%s232 + $0x60] sm:%s224] %v257
                %v259 = vld [vmem:[%s231 + $0xd0] sm:%s224]
                %260 = vst [vmem:[%s232 + $0x68] sm:%s224] %v259
                %v261 = vld [vmem:[%s231 + $0xe0] sm:%s224]
                %262 = vst [vmem:[%s232 + $0x70] sm:%s224] %v261
                %v263 = vld [vmem:[%s231 + $0xf0] sm:%s224]
                %264 = vst [vmem:[%s232 + $0x78] sm:%s224] %v263
                %v265 = vld [vmem:[%s231 + $0x100] sm:%s224]
                %266 = vst [vmem:[%s232 + $0x80] sm:%s224] %v265
                %v267 = vld [vmem:[%s231 + $0x110] sm:%s224]
                %268 = vst [vmem:[%s232 + $0x88] sm:%s224] %v267
                %v269 = vld [vmem:[%s231 + $0x120] sm:%s224]
                %270 = vst [vmem:[%s232 + $0x90] sm:%s224] %v269
                %v271 = vld [vmem:[%s231 + $0x130] sm:%s224]
                %272 = vst [vmem:[%s232 + $0x98] sm:%s224] %v271
                %v273 = vld [vmem:[%s231 + $0x140] sm:%s224]
                %274 = vst [vmem:[%s232 + $0xa0] sm:%s224] %v273
                %v275 = vld [vmem:[%s231 + $0x150] sm:%s224]
                %276 = vst [vmem:[%s232 + $0xa8] sm:%s224] %v275
                %v277 = vld [vmem:[%s231 + $0x160] sm:%s224]
                %278 = vst [vmem:[%s232 + $0xb0] sm:%s224] %v277
                %v279 = vld [vmem:[%s231 + $0x170] sm:%s224]
                %280 = vst [vmem:[%s232 + $0xb8] sm:%s224] %v279
                %v281 = vld [vmem:[%s231 + $0x180] sm:%s224]
                %282 = vst [vmem:[%s232 + $0xc0] sm:%s224] %v281
                %v283 = vld [vmem:[%s231 + $0x190] sm:%s224]
                %284 = vst [vmem:[%s232 + $0xc8] sm:%s224] %v283
                %v285 = vld [vmem:[%s231 + $0x1a0] sm:%s224]
                %286 = vst [vmem:[%s232 + $0xd0] sm:%s224] %v285
                %v287 = vld [vmem:[%s231 + $0x1b0] sm:%s224]
                %288 = vst [vmem:[%s232 + $0xd8] sm:%s224] %v287
                %v289 = vld [vmem:[%s231 + $0x1c0] sm:%s224]
                %290 = vst [vmem:[%s232 + $0xe0] sm:%s224] %v289
                %v291 = vld [vmem:[%s231 + $0x1d0] sm:%s224]
                %292 = vst [vmem:[%s232 + $0xe8] sm:%s224] %v291
                %v293 = vld [vmem:[%s231 + $0x1e0] sm:%s224]
                %294 = vst [vmem:[%s232 + $0xf0] sm:%s224] %v293
                %v295 = vld [vmem:[%s231 + $0x1f0] sm:%s224]
                %296 = vst [vmem:[%s232 + $0xf8] sm:%s224] %v295
              $region45: #{mlp_pallas.1} parent=39 // loop_footer
                %s230 = sadd.s32 1, %s226
              $region46: #{mlp_pallas.1} parent=39 // loop_footer_branch
                %225 = sbr.rel target = $region42
              $region47: #{mlp_pallas.1} parent=39 // loop_exit
                _
            $region40: #{mlp_pallas.1} parent=31 // pred_fallthru
              _
          $region32: #{mlp_pallas.1} parent=27 // pred_fallthru
            _
          %373 = vnop
        $region28: #{mlp_pallas.1} parent=23 // pred_fallthru
          _
        // Predicated region
        $region63: #{mlp_pallas.1} parent=23 // pred_check
          %p374 = pneg %p96
        $region64: #{mlp_pallas.1} parent=23 // pred_check_branch
          %376 = sbr.rel (%p374) target = $region66
        $region65: #{mlp_pallas.1} parent=23 // pred_region
          %s377 = smul.u32 2, %s20
          %p378 = scmp.lt.s32.totalorder %s377, 3
          %s379 = scalar_select %p378, %s377, 3
          %s380 = scalar_lea.vmem %s2, %s379
          %s381 = smul.u32 2, %s20
        $region66: #{mlp_pallas.1} parent=23 // pred_fallthru
          _
        // Predicated region
        $region67: #{mlp_pallas.1} parent=23 // pred_check
          %p382 = pneg %p122
        $region68: #{mlp_pallas.1} parent=23 // pred_check_branch
          %384 = sbr.rel (%p382) target = $region70
        $region69: #{mlp_pallas.1} parent=23 // pred_region
          %s385 = smul.u32 32, %s20
          %p386 = scmp.lt.s32.totalorder %s385, 63
          %s387 = scalar_select %p386, %s385, 63
          %s388 = smul.addr %s387, 2
          %s389 = smul.addr %s388, 4
          %s390 = scalar_lea.vmem %s3, %s389
          %s391 = smul.u32 32, %s20
        $region70: #{mlp_pallas.1} parent=23 // pred_fallthru
          _
      $region24: #{mlp_pallas.1} parent=5 // pred_fallthru
        _
      %p392 = scmp.le.s32.totalorder 1, %s12
      %p393 = scmp.lt.s32.totalorder %s12, 3
      %p394 = pnand %p392, %p393
      %p395 = pneg %p394
      // Predicated region
      $region71: #{mlp_pallas.1} parent=5 // pred_check
        _
      $region72: #{mlp_pallas.1} parent=5 // pred_check_branch
        %397 = sbr.rel (%p394) target = $region74
      $region73: #{mlp_pallas.1} parent=5 // pred_region
        %s398 = ssub.s32 %s12, 1
        %s399 = sand.u32 %s63, 1
        %s400 = sand.u32 %s63, 1
        %s401 = smul.addr %s400, 256
        %s402 = scalar_lea.vmem [#allocation2], %s401
        // Predicated region
        $region75: #{mlp_pallas.1} parent=73 // pred_check
          %p403 = pneg %p76
        $region76: #{mlp_pallas.1} parent=73 // pred_check_branch
          %405 = sbr.rel (%p403) target = $region78
        $region77: #{mlp_pallas.1} parent=73 // pred_region
          _
        $region78: #{mlp_pallas.1} parent=73 // pred_fallthru
          _
        %s406 = smul.u32 2, %s21
        %p407 = scmp.lt.s32.totalorder %s406, 1
        %s408 = scalar_select %p407, %s406, 1
        %s409 = smul.addr %s408, 2
        %s410 = smul.addr %s409, 8
        %s411 = scalar_lea.vmem %s0, %s410
        %p412 = pneg %p50
        %p413 = pneg %p47
        %s414 = sand.u32 %s63, 1
        %s415 = sand.u32 %s63, 1
        %s416 = smul.addr %s415, 256
        %s417 = scalar_lea.vmem [#allocation2], %s416
        %p418 = pneg %p76
        %p419 = pneg %p73
        %s420 = smul.u32 2, %s22
        %p421 = scmp.lt.s32.totalorder %s420, 3
        %s422 = scalar_select %p421, %s420, 3
        %s423 = scalar_lea.vmem %s2, %s422
        %p424 = pneg %p102
        %p425 = pneg %p99
        %s426 = smul.u32 32, %s22
        %p427 = scmp.lt.s32.totalorder %s426, 63
        %s428 = scalar_select %p427, %s426, 63
        %s429 = smul.addr %s428, 2
        %s430 = smul.addr %s429, 4
        %s431 = scalar_lea.vmem %s3, %s430
        %p432 = pneg %p128
        %p433 = pneg %p125
        %p434 = pneg %p149
        %p435 = pneg %p146
        %p436 = pneg %p175
        %p437 = pneg %p172
        %s438 = smul.u32 2, %s21
        %p439 = scmp.lt.s32.totalorder %s438, 1
        %s440 = scalar_select %p439, %s438, 1
        %s441 = smul.addr %s440, 2
        %s442 = smul.addr %s441, 8
        %s443 = scalar_lea.vmem %s0, %s442
        %s444 = smul.u32 2, %s21
        %s445 = smul.u32 2, %s22
        %s446 = smul.u32 2, %s22
        %p447 = scmp.lt.s32.totalorder %s446, 3
        %s448 = scalar_select %p447, %s446, 3
        %s449 = scalar_lea.vmem %s2, %s448
        %s450 = smul.u32 2, %s22
        %s451 = smul.u32 32, %s22
        %p452 = scmp.lt.s32.totalorder %s451, 63
        %s453 = scalar_select %p452, %s451, 63
        %s454 = smul.addr %s453, 2
        %s455 = smul.addr %s454, 4
        %s456 = scalar_lea.vmem %s3, %s455
        %s457 = smul.u32 32, %s22
        %s458 = smul.u32 2, %s21
        %p459 = scmp.eq.s32.totalorder %s22, 0
        // Predicated region
        $region79: #{mlp_pallas.1} parent=73 // pred_check
          %p460 = pneg %p459
        $region80: #{mlp_pallas.1} parent=73 // pred_check_branch
          %462 = sbr.rel (%p460) target = $region82
        $region81: #{mlp_pallas.1} parent=73 // pred_region
          %v463 = vld [vmem:[%s4] sm:$0x3]
          %v465 = vlaneseq
          %v466 = vshrl.u32 %v465, 7
          %v467 = vsub.s32 0, %v466
          %v468 = vrot.slane %v463, %v467
          %v469 = vlaneseq
          %v470 = vshrl.u32 %v469, 7
          %v471 = vsub.s32 1, %v470
          %v472 = vrot.slane %v463, %v471
          %475 = vst [vmem:[#allocation3] sm:$0xff] %v468
          %476 = vst [vmem:[#allocation3 + $0x8] sm:$0xff] %v472
          %477 = vst [vmem:[#allocation3 + $0x10] sm:$0xff] %v468
          %478 = vst [vmem:[#allocation3 + $0x18] sm:$0xff] %v472
        $region82: #{mlp_pallas.1} parent=73 // pred_fallthru
          _
        %v479 = vld [vmem:[%s443] sm:$0xff]
        %v480 = vld [vmem:[%s443 + $0x8] sm:$0xff]
        %v481 = vld [vmem:[%s443 + $0x10] sm:$0xff]
        %v482 = vld [vmem:[%s443 + $0x18] sm:$0xff]
        %v483 = vpack.c.bf16 %v481, %v479
        %v484 = vpack.c.bf16 %v482, %v480
        %v485 = vld [vmem:[%s402] sm:$0xff]
        %v486 = vld [vmem:[%s402 + $0x8] sm:$0xff]
        %v487 = vld [vmem:[%s402 + $0x10] sm:$0xff]
        %v488 = vld [vmem:[%s402 + $0x18] sm:$0xff]
        %v489 = vld [vmem:[%s402 + $0x20] sm:$0xff]
        %v490 = vld [vmem:[%s402 + $0x28] sm:$0xff]
        %v491 = vld [vmem:[%s402 + $0x30] sm:$0xff]
        %v492 = vld [vmem:[%s402 + $0x38] sm:$0xff]
        %v493 = vld [vmem:[%s402 + $0x40] sm:$0xff]
        %v494 = vld [vmem:[%s402 + $0x48] sm:$0xff]
        %v495 = vld [vmem:[%s402 + $0x50] sm:$0xff]
        %v496 = vld [vmem:[%s402 + $0x58] sm:$0xff]
        %v497 = vld [vmem:[%s402 + $0x60] sm:$0xff]
        %v498 = vld [vmem:[%s402 + $0x68] sm:$0xff]
        %v499 = vld [vmem:[%s402 + $0x70] sm:$0xff]
        %v500 = vld [vmem:[%s402 + $0x78] sm:$0xff]
        %v501 = vld [vmem:[%s402 + $0x80] sm:$0xff]
        %v502 = vld [vmem:[%s402 + $0x88] sm:$0xff]
        %v503 = vld [vmem:[%s402 + $0x90] sm:$0xff]
        %v504 = vld [vmem:[%s402 + $0x98] sm:$0xff]
        %v505 = vld [vmem:[%s402 + $0xa0] sm:$0xff]
        %v506 = vld [vmem:[%s402 + $0xa8] sm:$0xff]
        %v507 = vld [vmem:[%s402 + $0xb0] sm:$0xff]
        %v508 = vld [vmem:[%s402 + $0xb8] sm:$0xff]
        %v509 = vld [vmem:[%s402 + $0xc0] sm:$0xff]
        %v510 = vld [vmem:[%s402 + $0xc8] sm:$0xff]
        %v511 = vld [vmem:[%s402 + $0xd0] sm:$0xff]
        %v512 = vld [vmem:[%s402 + $0xd8] sm:$0xff]
        %v513 = vld [vmem:[%s402 + $0xe0] sm:$0xff]
        %v514 = vld [vmem:[%s402 + $0xe8] sm:$0xff]
        %v515 = vld [vmem:[%s402 + $0xf0] sm:$0xff]
        %v516 = vld [vmem:[%s402 + $0xf8] sm:$0xff]
        %v517 = vld [vmem:[%s449] sm:$0x3]
        %v519 = vlaneseq
        %v520 = vshrl.u32 %v519, 7
        %v521 = vsub.s32 0, %v520
        %v522 = vrot.slane %v517, %v521
        %v523 = vlaneseq
        %v524 = vshrl.u32 %v523, 7
        %v525 = vsub.s32 1, %v524
        %v526 = vrot.slane %v517, %v525
        %v561 = vunpack.c.l.b16 %v485
        %v562 = vunpack.c.h.b16 %v485
        %v563 = vunpack.c.l.b16 %v486
        %v564 = vunpack.c.h.b16 %v486
        %v565 = vunpack.c.l.b16 %v487
        %v566 = vunpack.c.h.b16 %v487
        %v567 = vunpack.c.l.b16 %v488
        %v568 = vunpack.c.h.b16 %v488
        %v569 = vunpack.c.l.b16 %v489
        %v570 = vunpack.c.h.b16 %v489
        %v571 = vunpack.c.l.b16 %v490
        %v572 = vunpack.c.h.b16 %v490
        %v573 = vunpack.c.l.b16 %v491
        %v574 = vunpack.c.h.b16 %v491
        %v575 = vunpack.c.l.b16 %v492
        %v576 = vunpack.c.h.b16 %v492
        %v577 = vunpack.c.l.b16 %v493
        %v578 = vunpack.c.h.b16 %v493
        %v579 = vunpack.c.l.b16 %v494
        %v580 = vunpack.c.h.b16 %v494
        %v581 = vunpack.c.l.b16 %v495
        %v582 = vunpack.c.h.b16 %v495
        %v583 = vunpack.c.l.b16 %v496
        %v584 = vunpack.c.h.b16 %v496
        %v585 = vunpack.c.l.b16 %v497
        %v586 = vunpack.c.h.b16 %v497
        %v587 = vunpack.c.l.b16 %v498
        %v588 = vunpack.c.h.b16 %v498
        %v589 = vunpack.c.l.b16 %v499
        %v590 = vunpack.c.h.b16 %v499
        %v591 = vunpack.c.l.b16 %v500
        %v592 = vunpack.c.h.b16 %v500
        %v593 = vunpack.c.l.b16 %v501
        %v594 = vunpack.c.h.b16 %v501
        %v595 = vunpack.c.l.b16 %v502
        %v596 = vunpack.c.h.b16 %v502
        %v597 = vunpack.c.l.b16 %v503
        %v598 = vunpack.c.h.b16 %v503
        %v599 = vunpack.c.l.b16 %v504
        %v600 = vunpack.c.h.b16 %v504
        %v601 = vunpack.c.l.b16 %v505
        %v602 = vunpack.c.h.b16 %v505
        %v603 = vunpack.c.l.b16 %v506
        %v604 = vunpack.c.h.b16 %v506
        %v605 = vunpack.c.l.b16 %v507
        %v606 = vunpack.c.h.b16 %v507
        %v607 = vunpack.c.l.b16 %v508
        %v608 = vunpack.c.h.b16 %v508
        %v609 = vunpack.c.l.b16 %v509
        %v610 = vunpack.c.h.b16 %v509
        %v611 = vunpack.c.l.b16 %v510
        %v612 = vunpack.c.h.b16 %v510
        %v613 = vunpack.c.l.b16 %v511
        %v614 = vunpack.c.h.b16 %v511
        %v615 = vunpack.c.l.b16 %v512
        %v616 = vunpack.c.h.b16 %v512
        %v617 = vunpack.c.l.b16 %v513
        %v618 = vunpack.c.h.b16 %v513
        %v619 = vunpack.c.l.b16 %v514
        %v620 = vunpack.c.h.b16 %v514
        %v621 = vunpack.c.l.b16 %v515
        %v622 = vunpack.c.h.b16 %v515
        %v623 = vunpack.c.l.b16 %v516
        %v624 = vunpack.c.h.b16 %v516
        %v625 = vpack.c.b16 %v563, %v561
        %v626 = vpack.c.b16 %v564, %v562
        %v627 = vpack.c.b16 %v567, %v565
        %v628 = vpack.c.b16 %v568, %v566
        %v629 = vpack.c.b16 %v571, %v569
        %v630 = vpack.c.b16 %v572, %v570
        %v631 = vpack.c.b16 %v575, %v573
        %v632 = vpack.c.b16 %v576, %v574
        %v633 = vpack.c.b16 %v579, %v577
        %v634 = vpack.c.b16 %v580, %v578
        %v635 = vpack.c.b16 %v583, %v581
        %v636 = vpack.c.b16 %v584, %v582
        %v637 = vpack.c.b16 %v587, %v585
        %v638 = vpack.c.b16 %v588, %v586
        %v639 = vpack.c.b16 %v591, %v589
        %v640 = vpack.c.b16 %v592, %v590
        %v641 = vpack.c.b16 %v595, %v593
        %v642 = vpack.c.b16 %v596, %v594
        %v643 = vpack.c.b16 %v599, %v597
        %v644 = vpack.c.b16 %v600, %v598
        %v645 = vpack.c.b16 %v603, %v601
        %v646 = vpack.c.b16 %v604, %v602
        %v647 = vpack.c.b16 %v607, %v605
        %v648 = vpack.c.b16 %v608, %v606
        %v649 = vpack.c.b16 %v611, %v609
        %v650 = vpack.c.b16 %v612, %v610
        %v651 = vpack.c.b16 %v615, %v613
        %v652 = vpack.c.b16 %v616, %v614
        %v653 = vpack.c.b16 %v619, %v617
        %v654 = vpack.c.b16 %v620, %v618
        %v655 = vpack.c.b16 %v623, %v621
        %v656 = vpack.c.b16 %v624, %v622
        %689 = vmatprep.subr.bf16.mxu0 %v640
        %690 = vmatpush1.bf16.msra.mxu0 %v639
        %691 = vmatprep.subr.bf16.mxu0 %v638
        %692 = vmatpush1.bf16.msra.mxu0 %v637
        %693 = vmatprep.subr.bf16.mxu0 %v636
        %694 = vmatpush1.bf16.msra.mxu0 %v635
        %695 = vmatprep.subr.bf16.mxu0 %v634
        %696 = vmatpush1.bf16.msra.mxu0 %v633
        %697 = vmatprep.subr.bf16.mxu0 %v632
        %698 = vmatpush1.bf16.msra.mxu0 %v631
        %699 = vmatprep.subr.bf16.mxu0 %v630
        %700 = vmatpush1.bf16.msra.mxu0 %v629
        %701 = vmatprep.subr.bf16.mxu0 %v628
        %702 = vmatpush1.bf16.msra.mxu0 %v627
        %703 = vmatprep.subr.bf16.mxu0 %v626
        %704 = vmatpush1.bf16.msra.mxu0 %v625
        %705 = vmatprep.subr.bf16.mxu0 %v656
        %706 = vmatpush2.bf16.msra.mxu0 %v655
        %707 = vmatprep.subr.bf16.mxu0 %v654
        %708 = vmatpush2.bf16.msra.mxu0 %v653
        %709 = vmatprep.subr.bf16.mxu0 %v652
        %710 = vmatpush2.bf16.msra.mxu0 %v651
        %711 = vmatprep.subr.bf16.mxu0 %v650
        %712 = vmatpush2.bf16.msra.mxu0 %v649
        %713 = vmatprep.subr.bf16.mxu0 %v648
        %714 = vmatpush2.bf16.msra.mxu0 %v647
        %715 = vmatprep.subr.bf16.mxu0 %v646
        %716 = vmatpush2.bf16.msra.mxu0 %v645
        %717 = vmatprep.subr.bf16.mxu0 %v644
        %718 = vmatpush2.bf16.msra.mxu0 %v643
        %719 = vmatprep.subr.bf16.mxu0 %v642
        %720 = vmatpush2.bf16.msra.mxu0 %v641
        %721 = vmatprep.mubr.bf16.mxu0 %v484
        %722 = vmatmul.mubr.bf16.gmra.mxu0 %v483
        %v723 = vpop.f32.mrf.mxu0
        %v724 = vadd.f32 %v522, %v723
        %v725 = vpop.f32.mrf.mxu0
        %v726 = vadd.f32 %v526, %v725
        %v727 = vpop.f32.mrf.mxu0
        %v728 = vadd.f32 %v522, %v727
        %v729 = vpop.f32.mrf.mxu0
        %v730 = vadd.f32 %v526, %v729
        %731 = vdwg.mxu0
        %v732 = vmul.f32 %v724, 0.5
        %v733 = vmul.f32 %v726, 0.5
        %v734 = vmul.f32 %v728, 0.5
        %v735 = vmul.f32 %v730, 0.5
        %v736 = vmul.f32 %v724, 0.70710677
        %v737 = vmul.f32 %v726, 0.70710677
        %v738 = vmul.f32 %v728, 0.70710677
        %v739 = vmul.f32 %v730, 0.70710677
        %vm740 = vcmp.ge.f32.partialorder %v736, 0.0
        %vm741 = vcmp.ge.f32.partialorder %v737, 0.0
        %vm742 = vcmp.ge.f32.partialorder %v738, 0.0
        %vm743 = vcmp.ge.f32.partialorder %v739, 0.0
        %v744 = vsel %vm740, 1.0, -1.0
        %v745 = vsel %vm741, 1.0, -1.0
        %v746 = vsel %vm742, 1.0, -1.0
        %v747 = vsel %vm743, 1.0, -1.0
        %v748 = vand.u32 2147483647, %v736
        %v749 = vand.u32 2147483647, %v737
        %v750 = vand.u32 2147483647, %v738
        %v751 = vand.u32 2147483647, %v739
        %v752 = vmul.f32 %v748, 0.3275911
        %v753 = vmul.f32 %v749, 0.3275911
        %v754 = vmul.f32 %v750, 0.3275911
        %v755 = vmul.f32 %v751, 0.3275911
        %v756 = vadd.f32 %v752, 1.0
        %v757 = vadd.f32 %v753, 1.0
        %v758 = vadd.f32 %v754, 1.0
        %v759 = vadd.f32 %v755, 1.0
        %v760 = vrcp.pop %v756
        %v761 = vmul.f32 1.0, %v760
        %v762 = vrcp.pop %v757
        %v763 = vmul.f32 1.0, %v762
        %v764 = vrcp.pop %v758
        %v765 = vmul.f32 1.0, %v764
        %v766 = vrcp.pop %v759
        %v767 = vmul.f32 1.0, %v766
        %v768 = vmul.f32 %v761, 1.0614054
        %v769 = vmul.f32 %v763, 1.0614054
        %v770 = vmul.f32 %v765, 1.0614054
        %v771 = vmul.f32 %v767, 1.0614054
        %v772 = vadd.f32 %v768, -1.4531521
        %v773 = vadd.f32 %v769, -1.4531521
        %v774 = vadd.f32 %v770, -1.4531521
        %v775 = vadd.f32 %v771, -1.4531521
        %v776 = vmul.f32 %v761, %v772
        %v777 = vmul.f32 %v763, %v773
        %v778 = vmul.f32 %v765, %v774
        %v779 = vmul.f32 %v767, %v775
        %v780 = vadd.f32 %v776, 1.4214138
        %v781 = vadd.f32 %v777, 1.4214138
        %v782 = vadd.f32 %v778, 1.4214138
        %v783 = vadd.f32 %v779, 1.4214138
        %v784 = vmul.f32 %v761, %v780
        %v785 = vmul.f32 %v763, %v781
        %v786 = vmul.f32 %v765, %v782
        %v787 = vmul.f32 %v767, %v783
        %v788 = vadd.f32 %v784, -0.28449672
        %v789 = vadd.f32 %v785, -0.28449672
        %v790 = vadd.f32 %v786, -0.28449672
        %v791 = vadd.f32 %v787, -0.28449672
        %v792 = vmul.f32 %v761, %v788
        %v793 = vmul.f32 %v763, %v789
        %v794 = vmul.f32 %v765, %v790
        %v795 = vmul.f32 %v767, %v791
        %v796 = vadd.f32 %v792, 0.2548296
        %v797 = vadd.f32 %v793, 0.2548296
        %v798 = vadd.f32 %v794, 0.2548296
        %v799 = vadd.f32 %v795, 0.2548296
        %v800 = vmul.f32 %v761, %v796
        %v801 = vmul.f32 %v763, %v797
        %v802 = vmul.f32 %v765, %v798
        %v803 = vmul.f32 %v767, %v799
        %v804 = vsub.f32 0.0, %v748
        %v805 = vsub.f32 0.0, %v749
        %v806 = vsub.f32 0.0, %v750
        %v807 = vsub.f32 0.0, %v751
        %v808 = vmul.f32 %v804, %v748
        %v809 = vmul.f32 %v805, %v749
        %v810 = vmul.f32 %v806, %v750
        %v811 = vmul.f32 %v807, %v751
        %v812 = vmul.f32 %v808, 1.442695
        %v813 = vpow.pop %v812
        %v814 = vmul.f32 %v809, 1.442695
        %v815 = vpow.pop %v814
        %v816 = vmul.f32 %v810, 1.442695
        %v817 = vpow.pop %v816
        %v818 = vmul.f32 %v811, 1.442695
        %v819 = vpow.pop %v818
        %v820 = vmul.f32 %v800, %v813
        %v821 = vmul.f32 %v801, %v815
        %v822 = vmul.f32 %v802, %v817
        %v823 = vmul.f32 %v803, %v819
        %v824 = vsub.f32 1.0, %v820
        %v825 = vsub.f32 1.0, %v821
        %v826 = vsub.f32 1.0, %v822
        %v827 = vsub.f32 1.0, %v823
        %v828 = vmul.f32 %v744, %v824
        %v829 = vmul.f32 %v745, %v825
        %v830 = vmul.f32 %v746, %v826
        %v831 = vmul.f32 %v747, %v827
        %v832 = vadd.f32 %v828, 1.0
        %v833 = vadd.f32 %v829, 1.0
        %v834 = vadd.f32 %v830, 1.0
        %v835 = vadd.f32 %v831, 1.0
        %v836 = vmul.f32 %v732, %v832
        %v837 = vmul.f32 %v733, %v833
        %v838 = vmul.f32 %v734, %v834
        %v839 = vmul.f32 %v735, %v835
        %v840 = vld [vmem:[#allocation3] sm:$0xff]
        %v841 = vld [vmem:[#allocation3 + $0x8] sm:$0xff]
        %v842 = vld [vmem:[#allocation3 + $0x10] sm:$0xff]
        %v843 = vld [vmem:[#allocation3 + $0x18] sm:$0xff]
        %v844 = vpack.c.bf16 %v838, %v836
        %v845 = vpack.c.bf16 %v839, %v837
        %v846 = vld [vmem:[%s456] sm:$0xff]
        %v847 = vld [vmem:[%s456 + $0x8] sm:$0xff]
        %v848 = vld [vmem:[%s456 + $0x10] sm:$0xff]
        %v849 = vld [vmem:[%s456 + $0x18] sm:$0xff]
        %v850 = vld [vmem:[%s456 + $0x20] sm:$0xff]
        %v851 = vld [vmem:[%s456 + $0x28] sm:$0xff]
        %v852 = vld [vmem:[%s456 + $0x30] sm:$0xff]
        %v853 = vld [vmem:[%s456 + $0x38] sm:$0xff]
        %v854 = vld [vmem:[%s456 + $0x40] sm:$0xff]
        %v855 = vld [vmem:[%s456 + $0x48] sm:$0xff]
        %v856 = vld [vmem:[%s456 + $0x50] sm:$0xff]
        %v857 = vld [vmem:[%s456 + $0x58] sm:$0xff]
        %v858 = vld [vmem:[%s456 + $0x60] sm:$0xff]
        %v859 = vld [vmem:[%s456 + $0x68] sm:$0xff]
        %v860 = vld [vmem:[%s456 + $0x70] sm:$0xff]
        %v861 = vld [vmem:[%s456 + $0x78] sm:$0xff]
        %v862 = vld [vmem:[%s456 + $0x80] sm:$0xff]
        %v863 = vld [vmem:[%s456 + $0x88] sm:$0xff]
        %v864 = vld [vmem:[%s456 + $0x90] sm:$0xff]
        %v865 = vld [vmem:[%s456 + $0x98] sm:$0xff]
        %v866 = vld [vmem:[%s456 + $0xa0] sm:$0xff]
        %v867 = vld [vmem:[%s456 + $0xa8] sm:$0xff]
        %v868 = vld [vmem:[%s456 + $0xb0] sm:$0xff]
        %v869 = vld [vmem:[%s456 + $0xb8] sm:$0xff]
        %v870 = vld [vmem:[%s456 + $0xc0] sm:$0xff]
        %v871 = vld [vmem:[%s456 + $0xc8] sm:$0xff]
        %v872 = vld [vmem:[%s456 + $0xd0] sm:$0xff]
        %v873 = vld [vmem:[%s456 + $0xd8] sm:$0xff]
        %v874 = vld [vmem:[%s456 + $0xe0] sm:$0xff]
        %v875 = vld [vmem:[%s456 + $0xe8] sm:$0xff]
        %v876 = vld [vmem:[%s456 + $0xf0] sm:$0xff]
        %v877 = vld [vmem:[%s456 + $0xf8] sm:$0xff]
        %v910 = vunpack.c.l.b16 %v846
        %v911 = vunpack.c.h.b16 %v846
        %v912 = vunpack.c.l.b16 %v847
        %v913 = vunpack.c.h.b16 %v847
        %v914 = vunpack.c.l.b16 %v848
        %v915 = vunpack.c.h.b16 %v848
        %v916 = vunpack.c.l.b16 %v849
        %v917 = vunpack.c.h.b16 %v849
        %v918 = vunpack.c.l.b16 %v850
        %v919 = vunpack.c.h.b16 %v850
        %v920 = vunpack.c.l.b16 %v851
        %v921 = vunpack.c.h.b16 %v851
        %v922 = vunpack.c.l.b16 %v852
        %v923 = vunpack.c.h.b16 %v852
        %v924 = vunpack.c.l.b16 %v853
        %v925 = vunpack.c.h.b16 %v853
        %v926 = vunpack.c.l.b16 %v854
        %v927 = vunpack.c.h.b16 %v854
        %v928 = vunpack.c.l.b16 %v855
        %v929 = vunpack.c.h.b16 %v855
        %v930 = vunpack.c.l.b16 %v856
        %v931 = vunpack.c.h.b16 %v856
        %v932 = vunpack.c.l.b16 %v857
        %v933 = vunpack.c.h.b16 %v857
        %v934 = vunpack.c.l.b16 %v858
        %v935 = vunpack.c.h.b16 %v858
        %v936 = vunpack.c.l.b16 %v859
        %v937 = vunpack.c.h.b16 %v859
        %v938 = vunpack.c.l.b16 %v860
        %v939 = vunpack.c.h.b16 %v860
        %v940 = vunpack.c.l.b16 %v861
        %v941 = vunpack.c.h.b16 %v861
        %v942 = vunpack.c.l.b16 %v862
        %v943 = vunpack.c.h.b16 %v862
        %v944 = vunpack.c.l.b16 %v863
        %v945 = vunpack.c.h.b16 %v863
        %v946 = vunpack.c.l.b16 %v864
        %v947 = vunpack.c.h.b16 %v864
        %v948 = vunpack.c.l.b16 %v865
        %v949 = vunpack.c.h.b16 %v865
        %v950 = vunpack.c.l.b16 %v866
        %v951 = vunpack.c.h.b16 %v866
        %v952 = vunpack.c.l.b16 %v867
        %v953 = vunpack.c.h.b16 %v867
        %v954 = vunpack.c.l.b16 %v868
        %v955 = vunpack.c.h.b16 %v868
        %v956 = vunpack.c.l.b16 %v869
        %v957 = vunpack.c.h.b16 %v869
        %v958 = vunpack.c.l.b16 %v870
        %v959 = vunpack.c.h.b16 %v870
        %v960 = vunpack.c.l.b16 %v871
        %v961 = vunpack.c.h.b16 %v871
        %v962 = vunpack.c.l.b16 %v872
        %v963 = vunpack.c.h.b16 %v872
        %v964 = vunpack.c.l.b16 %v873
        %v965 = vunpack.c.h.b16 %v873
        %v966 = vunpack.c.l.b16 %v874
        %v967 = vunpack.c.h.b16 %v874
        %v968 = vunpack.c.l.b16 %v875
        %v969 = vunpack.c.h.b16 %v875
        %v970 = vunpack.c.l.b16 %v876
        %v971 = vunpack.c.h.b16 %v876
        %v972 = vunpack.c.l.b16 %v877
        %v973 = vunpack.c.h.b16 %v877
        %v974 = vpack.c.b16 %v912, %v910
        %v975 = vpack.c.b16 %v913, %v911
        %v976 = vpack.c.b16 %v916, %v914
        %v977 = vpack.c.b16 %v917, %v915
        %v978 = vpack.c.b16 %v920, %v918
        %v979 = vpack.c.b16 %v921, %v919
        %v980 = vpack.c.b16 %v924, %v922
        %v981 = vpack.c.b16 %v925, %v923
        %v982 = vpack.c.b16 %v928, %v926
        %v983 = vpack.c.b16 %v929, %v927
        %v984 = vpack.c.b16 %v932, %v930
        %v985 = vpack.c.b16 %v933, %v931
        %v986 = vpack.c.b16 %v936, %v934
        %v987 = vpack.c.b16 %v937, %v935
        %v988 = vpack.c.b16 %v940, %v938
        %v989 = vpack.c.b16 %v941, %v939
        %v990 = vpack.c.b16 %v944, %v942
        %v991 = vpack.c.b16 %v945, %v943
        %v992 = vpack.c.b16 %v948, %v946
        %v993 = vpack.c.b16 %v949, %v947
        %v994 = vpack.c.b16 %v952, %v950
        %v995 = vpack.c.b16 %v953, %v951
        %v996 = vpack.c.b16 %v956, %v954
        %v997 = vpack.c.b16 %v957, %v955
        %v998 = vpack.c.b16 %v960, %v958
        %v999 = vpack.c.b16 %v961, %v959
        %v1000 = vpack.c.b16 %v964, %v962
        %v1001 = vpack.c.b16 %v965, %v963
        %v1002 = vpack.c.b16 %v968, %v966
        %v1003 = vpack.c.b16 %v969, %v967
        %v1004 = vpack.c.b16 %v972, %v970
        %v1005 = vpack.c.b16 %v973, %v971
        %1038 = vmatprep.subr.bf16.mxu0 %v989
        %1039 = vmatpush1.bf16.msra.mxu0 %v988
        %1040 = vmatprep.subr.bf16.mxu0 %v987
        %1041 = vmatpush1.bf16.msra.mxu0 %v986
        %1042 = vmatprep.subr.bf16.mxu0 %v985
        %1043 = vmatpush1.bf16.msra.mxu0 %v984
        %1044 = vmatprep.subr.bf16.mxu0 %v983
        %1045 = vmatpush1.bf16.msra.mxu0 %v982
        %1046 = vmatprep.subr.bf16.mxu0 %v981
        %1047 = vmatpush1.bf16.msra.mxu0 %v980
        %1048 = vmatprep.subr.bf16.mxu0 %v979
        %1049 = vmatpush1.bf16.msra.mxu0 %v978
        %1050 = vmatprep.subr.bf16.mxu0 %v977
        %1051 = vmatpush1.bf16.msra.mxu0 %v976
        %1052 = vmatprep.subr.bf16.mxu0 %v975
        %1053 = vmatpush1.bf16.msra.mxu0 %v974
        %1054 = vmatprep.subr.bf16.mxu0 %v1005
        %1055 = vmatpush2.bf16.msra.mxu0 %v1004
        %1056 = vmatprep.subr.bf16.mxu0 %v1003
        %1057 = vmatpush2.bf16.msra.mxu0 %v1002
        %1058 = vmatprep.subr.bf16.mxu0 %v1001
        %1059 = vmatpush2.bf16.msra.mxu0 %v1000
        %1060 = vmatprep.subr.bf16.mxu0 %v999
        %1061 = vmatpush2.bf16.msra.mxu0 %v998
        %1062 = vmatprep.subr.bf16.mxu0 %v997
        %1063 = vmatpush2.bf16.msra.mxu0 %v996
        %1064 = vmatprep.subr.bf16.mxu0 %v995
        %1065 = vmatpush2.bf16.msra.mxu0 %v994
        %1066 = vmatprep.subr.bf16.mxu0 %v993
        %1067 = vmatpush2.bf16.msra.mxu0 %v992
        %1068 = vmatprep.subr.bf16.mxu0 %v991
        %1069 = vmatpush2.bf16.msra.mxu0 %v990
        %1070 = vmatprep.mubr.bf16.mxu0 %v845
        %1071 = vmatmul.mubr.bf16.gmra.mxu0 %v844
        %v1072 = vpop.f32.mrf.mxu0
        %v1073 = vadd.f32 0.0, %v1072
        %v1074 = vpop.f32.mrf.mxu0
        %v1075 = vadd.f32 0.0, %v1074
        %v1076 = vpop.f32.mrf.mxu0
        %v1077 = vadd.f32 0.0, %v1076
        %v1078 = vpop.f32.mrf.mxu0
        %v1079 = vadd.f32 0.0, %v1078
        %1080 = vdwg.mxu0
        %v1081 = vadd.f32 %v840, %v1073
        %v1082 = vadd.f32 %v841, %v1075
        %v1083 = vadd.f32 %v842, %v1077
        %v1084 = vadd.f32 %v843, %v1079
        %1085 = vst [vmem:[#allocation3] sm:$0xff] %v1081
        %1086 = vst [vmem:[#allocation3 + $0x8] sm:$0xff] %v1082
        %1087 = vst [vmem:[#allocation3 + $0x10] sm:$0xff] %v1083
        %1088 = vst [vmem:[#allocation3 + $0x18] sm:$0xff] %v1084
        // Predicated region
        $region83: #{mlp_pallas.1} parent=73 // pred_check
          %p1089 = pneg %p172
        $region84: #{mlp_pallas.1} parent=73 // pred_check_branch
          %1091 = sbr.rel (%p1089) target = $region86
        $region85: #{mlp_pallas.1} parent=73 // pred_region
          %s1092 = smul.u32 2, %s21
          %s1094 = ssub.s32 512, 512
          %1095 = vsyncadd [#allocation4], %s1094
          %s1096 = smul.addr %s1092, 2
          %s1097 = smul.addr %s1096, 128
          %s1098 = scalar_lea.hbm %s5, %s1097
          %s1099 = sshll.u32 [#allocation3], 4
          %s1100 = int_to_ptr.vmem [resolvable:$true] %s1099
          %1105 = dma.vmem_to_hbm [thread:$0]  %s1100, 512, %s1098, [#allocation4], 256, 256, 16
        $region86: #{mlp_pallas.1} parent=73 // pred_fallthru
          _
        // Predicated region
        $region87: #{mlp_pallas.1} parent=73 // pred_check
          %p1106 = pneg %p172
        $region88: #{mlp_pallas.1} parent=73 // pred_check_branch
          %1108 = sbr.rel (%p1106) target = $region90
        $region89: #{mlp_pallas.1} parent=73 // pred_region
          %1109 = dma.done [#allocation4], 512
        $region90: #{mlp_pallas.1} parent=73 // pred_fallthru
          _
      $region74: #{mlp_pallas.1} parent=5 // pred_fallthru
        _
      %p1110 = scmp.le.s32.totalorder 2, %s12
      // Predicated region
      $region91: #{mlp_pallas.1} parent=5 // pred_check
        %p1111 = pneg %p1110
      $region92: #{mlp_pallas.1} parent=5 // pred_check_branch
        %1113 = sbr.rel (%p1111) target = $region94
      $region93: #{mlp_pallas.1} parent=5 // pred_region
        %s1114 = ssub.s32 %s12, 2
      $region94: #{mlp_pallas.1} parent=5 // pred_fallthru
        _
    $region6: #{mlp_pallas.1} parent=1 // loop_footer
      %s16 = sadd.s32 1, %s12
    $region7: #{mlp_pallas.1} parent=1 // loop_footer_branch
      %11 = sbr.rel target = $region3
    $region8: #{mlp_pallas.1} parent=1 // loop_exit
      _
    %1115 = vsyncpa [#allocation4], 1
    %s1116 = scalar_lea.sflag [#allocation4], 1
    %1117 = vsyncpa %s1116, 1

</llo_original>
